<compile_context>
chip_gen: v6e
topology: v6e:2x2x1
jax: 0.10.0
libtpu: 0.0.40
codegen_flags: <defaults>
</compile_context>

<pallas_src>
import functools
import math

import jax
import jax.numpy as jnp
from jax.experimental import pallas as pl
from jax.experimental.pallas import tpu as pltpu

LANE = 128


def _round_up(n, m=LANE):
    return ((n + m - 1) // m) * m


def _pick_row_tile(n_pad):
    # n_pad is always a multiple of 128; take the largest tile that divides it.
    for tm in (512, 256, 128):
        if n_pad % tm == 0:
            return tm
    return n_pad


# ---------------------------------------------------------------------------
# Phase 1 kernel: per-relation feature transform, hoisted out of the
# aggregation grid.  One wide matmul against the relation-concatenated slab.
#   x_ref (tm, Cin_p)        bf16
#   w_ref (Cin_p, R*Cout_p)  bf16
#   h_ref (R, tm, Cout_p)    bf16   h_ref[r] = x_tile @ W[r]
# ---------------------------------------------------------------------------
def _transform_kernel(x_ref, w_ref, h_ref):
    num_rel, _tm, cout_p = h_ref.shape
    wide = jnp.dot(x_ref[...], w_ref[...],
                   preferred_element_type=jnp.float32)       # (tm, R*Cout_p)
    for r in range(num_rel):                                  # static unroll
        h_ref[r, :, :] = wide[:, r * cout_p:(r + 1) * cout_p].astype(h_ref.dtype)


# ---------------------------------------------------------------------------
# Phase 2 kernel: aggregation + root + bias (+ fused ReLU) for a row tile.
#   a_ref    (tm, R*N_pad)      bf16  adjacency row tile (relation-stacked cols,
#                                     mean normalization folded into weights)
#   h_ref    (R*N_pad, Cout_p)  bf16  relation-stacked transformed features
#   x_ref    (tm, Cin_p)        bf16  this tile's own rows (for root transform)
#   root_ref (Cin_p, Cout_p)    bf16
#   bias_ref (1, Cout_p)        f32
#   o_ref    (tm, Cout_p)       bf16 (layer 1, ReLU fused) / f32 (layer 2)
# ---------------------------------------------------------------------------
def _aggregate_kernel(a_ref, h_ref, x_ref, root_ref, bias_ref, o_ref, *,
                      apply_relu):
    acc = jnp.dot(a_ref[...], h_ref[...],
                  preferred_element_type=jnp.float32)         # deep K = R*N_pad
    acc = acc + jnp.dot(x_ref[...], root_ref[...],
                        preferred_element_type=jnp.float32)
    acc = acc + bias_ref[...]
    if apply_relu:
        acc = jnp.maximum(acc, 0.0)
    o_ref[...] = acc.astype(o_ref.dtype)


# ---------------------------------------------------------------------------
# One RGCNConv layer (padded, lane-dense shapes)
# ---------------------------------------------------------------------------
def rgcn_conv(x_bf, a_cat, w_cat, root, bias, *, apply_relu, out_dtype):
    n_pad, cin_p = x_bf.shape
    cout_p = root.shape[1]
    num_rel = w_cat.shape[1] // cout_p
    assert a_cat.shape == (n_pad, num_rel * n_pad)

    tm = _pick_row_tile(n_pad)

    # --- phase 1: H = X @ W_cat, computed once (not per output tile) ---------
    h = pl.pallas_call(
        _transform_kernel,
        out_shape=jax.ShapeDtypeStruct((num_rel, n_pad, cout_p), jnp.bfloat16),
        grid_spec=pltpu.PrefetchScalarGridSpec(
            num_scalar_prefetch=0,
            grid=(n_pad // tm,),
            in_specs=[
                pl.BlockSpec((tm, cin_p), lambda i: (i, 0)),            # x tile
                pl.BlockSpec((cin_p, num_rel * cout_p), lambda i: (0, 0)),  # W slab
            ],
            out_specs=pl.BlockSpec((num_rel, tm, cout_p), lambda i: (0, i, 0)),
        ),
        compiler_params=pltpu.CompilerParams(
            dimension_semantics=("parallel",)),
    )(x_bf, w_cat)
    h_cat = h.reshape(num_rel * n_pad, cout_p)   # contiguous reshape (free)

    # --- phase 2: out = A_cat @ H_cat + x @ root + bias [+ ReLU] -------------
    kernel = functools.partial(_aggregate_kernel, apply_relu=apply_relu)
    out = pl.pallas_call(
        kernel,
        out_shape=jax.ShapeDtypeStruct((n_pad, cout_p), out_dtype),
        grid_spec=pltpu.PrefetchScalarGridSpec(
            num_scalar_prefetch=0,
            grid=(n_pad // tm,),
            in_specs=[
                pl.BlockSpec((tm, num_rel * n_pad), lambda i: (i, 0)),   # A tile
                pl.BlockSpec((num_rel * n_pad, cout_p), lambda i: (0, 0)),  # H
                pl.BlockSpec((tm, cin_p), lambda i: (i, 0)),             # x tile
                pl.BlockSpec((cin_p, cout_p), lambda i: (0, 0)),         # root
                pl.BlockSpec((1, cout_p), lambda i: (0, 0)),             # bias
            ],
            out_specs=pl.BlockSpec((tm, cout_p), lambda i: (i, 0)),
        ),
        compiler_params=pltpu.CompilerParams(
            dimension_semantics=("parallel",)),
    )(a_cat, h_cat, x_bf, root, bias)
    return out


# ---------------------------------------------------------------------------
# Parameter construction (deterministic, mirrors RGCNConv.__init__ shapes)
# ---------------------------------------------------------------------------
def init_rgcn_params(key, in_c, out_c, num_relations, num_bases):
    R = num_relations * 2
    bound = 1.0 / math.sqrt(num_bases * in_c)   # uniform(size=num_bases*in_c, ...)
    params = {}
    for name in ("conv1", "conv2"):
        key, k1, k2, k3, k4 = jax.random.split(key, 5)
        params[name] = dict(
            basis=jax.random.uniform(k1, (num_bases, in_c, out_c),
                                     jnp.float32, -bound, bound),
            att=jax.random.uniform(k2, (R, num_bases),
                                   jnp.float32, -bound, bound),
            root=jax.random.uniform(k3, (in_c, out_c),
                                    jnp.float32, -bound, bound),
            bias=jax.random.uniform(k4, (out_c,),
                                    jnp.float32, -bound, bound),
        )
    return params


# ---------------------------------------------------------------------------
# Per-layer parameter packing: basis combination, zero-padding to 128 lanes,
# relation-concatenated weight slab, bf16 casts for the MXU.
# ---------------------------------------------------------------------------
def _layer_params(p, R, cin_p):
    nb, cin, cout = p["basis"].shape
    cout_p = _round_up(cout)
    w_rel = (p["att"] @ p["basis"].reshape(nb, -1)).reshape(R, cin, cout)
    w_rel = jnp.pad(w_rel, ((0, 0), (0, cin_p - cin), (0, cout_p - cout)))
    # relation-concat along the output dim: w_cat[:, r*cout_p + c] == W[r][:, c]
    w_cat = jnp.transpose(w_rel, (1, 0, 2)).reshape(cin_p, R * cout_p)
    root = jnp.pad(p["root"], ((0, cin_p - cin), (0, cout_p - cout)))
    bias = jnp.pad(p["bias"], (0, cout_p - cout)).reshape(1, cout_p)
    return (w_cat.astype(jnp.bfloat16), root.astype(jnp.bfloat16),
            bias.astype(jnp.float32), cout, cout_p)


# ---------------------------------------------------------------------------
# RGCN.forward
# ---------------------------------------------------------------------------
def rgcn_forward(params, x, edge_index, edge_attr, edge_type, edge_norm,
                 num_relations):
    # TODO(synk): edge_encoder(edge_attr) is computed in the PyTorch forward but
    # its output is never consumed by message(); the dead Linear(4, in_c) is
    # omitted.
    del edge_attr
    N, cin = x.shape
    R = num_relations * 2
    cin_p = _round_up(cin)
    n_pad = _round_up(N)

    src = edge_index[0].astype(jnp.int32)   # x_j = x[edge_index[0]]
    tgt = edge_index[1].astype(jnp.int32)   # aggregate at edge_index[1]
    et = jnp.squeeze(edge_type, 1).astype(jnp.int32)
    E = src.shape[0]
    en = (edge_norm.astype(jnp.float32) if edge_norm is not None
          else jnp.ones((E,), jnp.float32))

    # Densify the edge list (glue, plain JAX) directly in relation-stacked
    # layout with the 'mean' normalization folded in:
    #   a_cat[i, r*n_pad + j] = sum_{edges j->i of type r} edge_norm / indeg(i)
    # TODO(synk): O(R*N^2) densification via XLA scatter is the scalability
    # cliff; for large graphs build per-tile adjacency inside a kernel from a
    # scalar-prefetched edge list instead.
    deg = jnp.zeros((N,), jnp.float32).at[tgt].add(1.0)
    deg_inv = 1.0 / jnp.maximum(deg, 1.0)
    a_cat = (jnp.zeros((n_pad, R * n_pad), jnp.float32)
             .at[tgt, et * n_pad + src].add(en * deg_inv[tgt])
             .astype(jnp.bfloat16))

    x_bf = jnp.pad(x.astype(jnp.float32),
                   ((0, n_pad - N), (0, cin_p - cin))).astype(jnp.bfloat16)

    w1, r1, b1, _cout1, cout1_p = _layer_params(params["conv1"], R, cin_p)
    # ReLU fused into the epilogue; layer-1 activations stay bf16 end-to-end.
    h1 = rgcn_conv(x_bf, a_cat, w1, r1, b1,
                   apply_relu=True, out_dtype=jnp.bfloat16)
    # TODO(synk): F.dropout(p, training=self.training) — inference mode assumed,
    # dropout is identity.
    w2, r2, b2, cout2, _cout2_p = _layer_params(params["conv2"], R, cout1_p)
    out = rgcn_conv(h1, a_cat, w2, r2, b2,
                    apply_relu=False, out_dtype=jnp.float32)
    return out[:N, :cout2]


# ---------------------------------------------------------------------------
# Plain-JAX reference (per-edge gather / scatter-mean, PyG semantics, f32)
# ---------------------------------------------------------------------------
def rgcn_reference(params, x, edge_index, edge_type, edge_norm, num_relations):
    R = num_relations * 2
    N, _ = x.shape
    src = edge_index[0]
    tgt = edge_index[1]
    et = jnp.squeeze(edge_type, 1)
    deg = jnp.zeros((N,), jnp.float32).at[tgt].add(1.0)

    def conv(p, h):
        nb, _, co = p["basis"].shape
        w_rel = (p["att"] @ p["basis"].reshape(nb, -1)).reshape(R, -1, co)
        xj = h[src]                                # [E, Cin]
        w_e = w_rel[et]                            # [E, Cin, Cout]
        msg = jnp.einsum("ec,eco->eo", xj, w_e) * edge_norm[:, None]
        agg = jnp.zeros((N, co), jnp.float32).at[tgt].add(msg)
        agg = agg / jnp.maximum(deg, 1.0)[:, None]
        return agg + h @ p["root"] + p["bias"]

    h = jax.nn.relu(conv(params["conv1"], x))
    return conv(params["conv2"], h)


if __name__ == "__main__":
    key = jax.random.PRNGKey(0)
    N, E = 64, 128
    num_relations, num_bases = 3, 4
    in_c = out_c = 100
    R = num_relations * 2

    key, kx, ke, kt, ka, kn, kp = jax.random.split(key, 7)
    x = jax.random.normal(kx, (N, in_c), jnp.float32)          # entity features
    edge_index = jax.random.randint(ke, (2, E), 0, N, jnp.int32)
    edge_type = jax.random.randint(kt, (E, 1), 0, R, jnp.int32)
    edge_attr = jax.random.normal(ka, (E, 4), jnp.float32)
    edge_norm = jax.random.uniform(kn, (E,), jnp.float32)

    params = init_rgcn_params(kp, in_c, out_c, num_relations, num_bases)

    out = rgcn_forward(params, x, edge_index, edge_attr, edge_type, edge_norm,
                       num_relations)
    jax.block_until_ready(out)

    ref = rgcn_reference(params, x, edge_index, edge_type, edge_norm,
                         num_relations)
    assert out.shape == (N, out_c), out.shape
    # bf16 matmul inputs (f32 accumulation) -> slightly looser tolerance.
    assert jnp.allclose(out, ref, atol=2e-2, rtol=2e-2), (
        float(jnp.max(jnp.abs(out - ref))))

    print("KERNEL_OK")
</pallas_src>

<mosaic_0001>
module attributes {stable_mosaic.version = 11 : i64} {
  func.func @_transform_kernel(%arg0: i32, %arg1: memref<128x128xbf16, #tpu.memory_space<vmem>>, %arg2: memref<128x768xbf16, #tpu.memory_space<vmem>>, %arg3: memref<6x128x128xbf16, #tpu.memory_space<vmem>>) attributes {dimension_semantics = [#tpu.dimension_semantics<parallel>], iteration_bounds = array<i64: 1>, scalar_prefetch = 0 : i64, scratch_operands = 0 : i64, tpu.core_type = #tpu.core_type<tc>, window_params = [{transform_indices = @transform_0, window_bounds = array<i64: 128, 128>}, {pipeline_mode = #tpu.pipeline_mode<synchronous>, transform_indices = @transform_1, window_bounds = array<i64: 128, 768>}, {transform_indices = @transform_2, window_bounds = array<i64: 6, 128, 128>}]} {
    %c0 = arith.constant 0 : index
    %c0_0 = arith.constant 0 : index
    %0 = vector.load %arg1[%c0, %c0_0] : memref<128x128xbf16, #tpu.memory_space<vmem>>, vector<128x128xbf16>
    %c0_1 = arith.constant 0 : index
    %c0_2 = arith.constant 0 : index
    %1 = vector.load %arg2[%c0_1, %c0_2] : memref<128x768xbf16, #tpu.memory_space<vmem>>, vector<128x768xbf16>
    %cst = arith.constant dense<0.000000e+00> : vector<128x768xf32>
    %2 = tpu.matmul %0, %1, %cst {dimension_numbers = #tpu.dot_dimension_numbers<[1], [0], [0], [1], [0, 0, 1, 1], [], []>} : vector<128x128xbf16>, vector<128x768xbf16>, vector<128x768xf32> -> vector<128x768xf32>
    %3 = vector.extract_strided_slice %2 {offsets = [0, 0], sizes = [128, 128], strides = [1, 1]} : vector<128x768xf32> to vector<128x128xf32>
    %4 = arith.truncf %3 : vector<128x128xf32> to vector<128x128xbf16>
    %c0_3 = arith.constant 0 : index
    %c0_4 = arith.constant 0 : index
    %c0_5 = arith.constant 0 : index
    %5 = vector.load %arg3[%c0_3, %c0_4, %c0_5] : memref<6x128x128xbf16, #tpu.memory_space<vmem>>, vector<1x128x128xbf16>
    %6 = vector.shape_cast %5 : vector<1x128x128xbf16> to vector<128x128xbf16>
    %7 = vector.shape_cast %4 : vector<128x128xbf16> to vector<1x128x128xbf16>
    tpu.vector_store %arg3[%c0_3, %c0_4, %c0_5], %7 {strides = array<i32>} : memref<6x128x128xbf16, #tpu.memory_space<vmem>>, vector<1x128x128xbf16>,
    %8 = vector.extract_strided_slice %2 {offsets = [0, 128], sizes = [128, 128], strides = [1, 1]} : vector<128x768xf32> to vector<128x128xf32>
    %9 = arith.truncf %8 : vector<128x128xf32> to vector<128x128xbf16>
    %c1 = arith.constant 1 : index
    %c0_6 = arith.constant 0 : index
    %c0_7 = arith.constant 0 : index
    %10 = vector.load %arg3[%c1, %c0_6, %c0_7] : memref<6x128x128xbf16, #tpu.memory_space<vmem>>, vector<1x128x128xbf16>
    %11 = vector.shape_cast %10 : vector<1x128x128xbf16> to vector<128x128xbf16>
    %12 = vector.shape_cast %9 : vector<128x128xbf16> to vector<1x128x128xbf16>
    tpu.vector_store %arg3[%c1, %c0_6, %c0_7], %12 {strides = array<i32>} : memref<6x128x128xbf16, #tpu.memory_space<vmem>>, vector<1x128x128xbf16>,
    %13 = vector.extract_strided_slice %2 {offsets = [0, 256], sizes = [128, 128], strides = [1, 1]} : vector<128x768xf32> to vector<128x128xf32>
    %14 = arith.truncf %13 : vector<128x128xf32> to vector<128x128xbf16>
    %c2 = arith.constant 2 : index
    %c0_8 = arith.constant 0 : index
    %c0_9 = arith.constant 0 : index
    %15 = vector.load %arg3[%c2, %c0_8, %c0_9] : memref<6x128x128xbf16, #tpu.memory_space<vmem>>, vector<1x128x128xbf16>
    %16 = vector.shape_cast %15 : vector<1x128x128xbf16> to vector<128x128xbf16>
    %17 = vector.shape_cast %14 : vector<128x128xbf16> to vector<1x128x128xbf16>
    tpu.vector_store %arg3[%c2, %c0_8, %c0_9], %17 {strides = array<i32>} : memref<6x128x128xbf16, #tpu.memory_space<vmem>>, vector<1x128x128xbf16>,
    %18 = vector.extract_strided_slice %2 {offsets = [0, 384], sizes = [128, 128], strides = [1, 1]} : vector<128x768xf32> to vector<128x128xf32>
    %19 = arith.truncf %18 : vector<128x128xf32> to vector<128x128xbf16>
    %c3 = arith.constant 3 : index
    %c0_10 = arith.constant 0 : index
    %c0_11 = arith.constant 0 : index
    %20 = vector.load %arg3[%c3, %c0_10, %c0_11] : memref<6x128x128xbf16, #tpu.memory_space<vmem>>, vector<1x128x128xbf16>
    %21 = vector.shape_cast %20 : vector<1x128x128xbf16> to vector<128x128xbf16>
    %22 = vector.shape_cast %19 : vector<128x128xbf16> to vector<1x128x128xbf16>
    tpu.vector_store %arg3[%c3, %c0_10, %c0_11], %22 {strides = array<i32>} : memref<6x128x128xbf16, #tpu.memory_space<vmem>>, vector<1x128x128xbf16>,
    %23 = vector.extract_strided_slice %2 {offsets = [0, 512], sizes = [128, 128], strides = [1, 1]} : vector<128x768xf32> to vector<128x128xf32>
    %24 = arith.truncf %23 : vector<128x128xf32> to vector<128x128xbf16>
    %c4 = arith.constant 4 : index
    %c0_12 = arith.constant 0 : index
    %c0_13 = arith.constant 0 : index
    %25 = vector.load %arg3[%c4, %c0_12, %c0_13] : memref<6x128x128xbf16, #tpu.memory_space<vmem>>, vector<1x128x128xbf16>
    %26 = vector.shape_cast %25 : vector<1x128x128xbf16> to vector<128x128xbf16>
    %27 = vector.shape_cast %24 : vector<128x128xbf16> to vector<1x128x128xbf16>
    tpu.vector_store %arg3[%c4, %c0_12, %c0_13], %27 {strides = array<i32>} : memref<6x128x128xbf16, #tpu.memory_space<vmem>>, vector<1x128x128xbf16>,
    %28 = vector.extract_strided_slice %2 {offsets = [0, 640], sizes = [128, 128], strides = [1, 1]} : vector<128x768xf32> to vector<128x128xf32>
    %29 = arith.truncf %28 : vector<128x128xf32> to vector<128x128xbf16>
    %c5 = arith.constant 5 : index
    %c0_14 = arith.constant 0 : index
    %c0_15 = arith.constant 0 : index
    %30 = vector.load %arg3[%c5, %c0_14, %c0_15] : memref<6x128x128xbf16, #tpu.memory_space<vmem>>, vector<1x128x128xbf16>
    %31 = vector.shape_cast %30 : vector<1x128x128xbf16> to vector<128x128xbf16>
    %32 = vector.shape_cast %29 : vector<128x128xbf16> to vector<1x128x128xbf16>
    tpu.vector_store %arg3[%c5, %c0_14, %c0_15], %32 {strides = array<i32>} : memref<6x128x128xbf16, #tpu.memory_space<vmem>>, vector<1x128x128xbf16>,
    return
  }
  func.func @transform_0(%arg0: i32) -> (i32, i32) {
    %c0_i32 = arith.constant 0 : i32
    %c0_i32_0 = arith.constant 0 : i32
    return %arg0, %c0_i32 : i32, i32
  }
  func.func @transform_1(%arg0: i32) -> (i32, i32) {
    %c0_i32 = arith.constant 0 : i32
    %c0_i32_0 = arith.constant 0 : i32
    %c0_i32_1 = arith.constant 0 : i32
    return %c0_i32, %c0_i32_0 : i32, i32
  }
  func.func @transform_2(%arg0: i32) -> (i32, i32, i32) {
    %c0_i32 = arith.constant 0 : i32
    %c0_i32_0 = arith.constant 0 : i32
    %c0_i32_1 = arith.constant 0 : i32
    return %c0_i32, %arg0, %c0_i32_0 : i32, i32, i32
  }
}

</mosaic_0001>

<llo_original>
// kernel: tpu_custom_call.1
$region0: #{tpu_custom_call.1}
  #allocation0 [shape = 'u32[]', space=smem, size = 0x4, offset = 0x4, fixed_abs, tag = 'smem constant byte address 0x4 - core index']
  #allocation1 [shape = 'u32[144,128]{1,0:T(1,128)}', space=vmem, size = 0x12000, scoped, tag = 'internal scratch']
  %s0 = inlined_call_operand.hbm [shape: bf16[128,128], index: 0, kind: input, shape index: {}]
  %s1 = inlined_call_operand.hbm [shape: bf16[128,768], index: 1, kind: input, shape index: {}]
  %s2 = inlined_call_operand.hbm [shape: bf16[6,128,128], index: 2, kind: output, shape index: {}]
  %s3 = sld [smem:[#allocation0]]
  $region26: #{tpu_custom_call.1} parent=0
    _
  %s5 = ssub.s32 1, %s3
  %s6 = scalar_select 0, %s5, %s3
  $region1: #{tpu_custom_call.1} parent=0
    #allocation2 [shape = 'u8[32768]{0}', space=vmem, size = 0x8000, scoped, tag = 'input window, operand 0, single buffered']
    #allocation3 [shape = 's32[1]{0}', space=sflag, size = 0x4, scoped, tag = 'scoped memory for tpu_custom_call.1']
    #allocation4 [shape = 's32[1]{0}', space=sflag, size = 0x4, scoped, tag = 'scoped memory for tpu_custom_call.1']
    #allocation5 [shape = 'u8[196608]{0}', space=vmem, size = 0x30000, scoped, tag = 'input window, operand 1, single buffered']
    #allocation6 [shape = 's32[1]{0}', space=sflag, size = 0x4, scoped, tag = 'scoped memory for tpu_custom_call.1']
    #allocation7 [shape = 'u8[196608]{0}', space=vmem, size = 0x30000, scoped, tag = 'output window, operand 0, single buffered']
    %7 = vsyncpa [#allocation3], 0
    %8 = vsyncpa [#allocation6], 0
    %9 = vsyncpa [#allocation4], 0
    // Predicated region
    $region2: #{tpu_custom_call.1} parent=1 // pred_check
      _
    $region3: #{tpu_custom_call.1} parent=1 // pred_check_branch
      %11 = sbr.rel (0) target = $region5
    $region4: #{tpu_custom_call.1} parent=1 // pred_region
      %s13 = ssub.s32 1024, 1024
      %14 = vsyncadd [#allocation3], %s13
      %s15 = sshll.u32 [#allocation2], 4
      %s16 = int_to_ptr.vmem [resolvable:$true] %s15
      %21 = dma.hbm_to_vmem [thread:$0]  %s0, 1024, %s16, [#allocation3], 64, 64, 4
    $region5: #{tpu_custom_call.1} parent=1 // pred_fallthru
      _
    // Predicated region
    $region6: #{tpu_custom_call.1} parent=1 // pred_check
      _
    $region7: #{tpu_custom_call.1} parent=1 // pred_check_branch
      %23 = sbr.rel (0) target = $region9
    $region8: #{tpu_custom_call.1} parent=1 // pred_region
      %s25 = ssub.s32 6144, 6144
      %26 = vsyncadd [#allocation6], %s25
      %s27 = sshll.u32 [#allocation5], 4
      %s28 = int_to_ptr.vmem [resolvable:$true] %s27
      %33 = dma.hbm_to_vmem [thread:$0]  %s1, 6144, %s28, [#allocation6], 384, 384, 24
    $region9: #{tpu_custom_call.1} parent=1 // pred_fallthru
      _
    // Predicated region
    $region10: #{tpu_custom_call.1} parent=1 // pred_check
      _
    $region11: #{tpu_custom_call.1} parent=1 // pred_check_branch
      %35 = sbr.rel (0) target = $region13
    $region12: #{tpu_custom_call.1} parent=1 // pred_region
      %36 = dma.done [#allocation3], 1024
    $region13: #{tpu_custom_call.1} parent=1 // pred_fallthru
      _
    // Predicated region
    $region14: #{tpu_custom_call.1} parent=1 // pred_check
      _
    $region15: #{tpu_custom_call.1} parent=1 // pred_check_branch
      %38 = sbr.rel (0) target = $region17
    $region16: #{tpu_custom_call.1} parent=1 // pred_region
      %39 = dma.done [#allocation6], 6144
    $region17: #{tpu_custom_call.1} parent=1 // pred_fallthru
      _
    %v41 = vld [vmem:[#allocation2] sm:$0xf]
    %v42 = vld [vmem:[#allocation2 + $0x4] sm:$0xf]
    %v43 = vld [vmem:[#allocation2 + $0x8] sm:$0xf]
    %v44 = vld [vmem:[#allocation2 + $0xc] sm:$0xf]
    %v45 = vld [vmem:[#allocation2 + $0x10] sm:$0xf]
    %v46 = vld [vmem:[#allocation2 + $0x14] sm:$0xf]
    %v47 = vld [vmem:[#allocation2 + $0x18] sm:$0xf]
    %v48 = vld [vmem:[#allocation2 + $0x1c] sm:$0xf]
    %v49 = vld [vmem:[#allocation2 + $0x20] sm:$0xf]
    %v50 = vld [vmem:[#allocation2 + $0x24] sm:$0xf]
    %v51 = vld [vmem:[#allocation2 + $0x28] sm:$0xf]
    %v52 = vld [vmem:[#allocation2 + $0x2c] sm:$0xf]
    %v53 = vld [vmem:[#allocation2 + $0x30] sm:$0xf]
    %v54 = vld [vmem:[#allocation2 + $0x34] sm:$0xf]
    %v55 = vld [vmem:[#allocation2 + $0x38] sm:$0xf]
    %v56 = vld [vmem:[#allocation2 + $0x3c] sm:$0xf]
    %v57 = vld [vmem:[#allocation5] sm:$0xff]
    %v58 = vld [vmem:[#allocation5 + $0x8] sm:$0xff]
    %v59 = vld [vmem:[#allocation5 + $0x10] sm:$0xff]
    %v60 = vld [vmem:[#allocation5 + $0x18] sm:$0xff]
    %v61 = vld [vmem:[#allocation5 + $0x20] sm:$0xff]
    %v62 = vld [vmem:[#allocation5 + $0x28] sm:$0xff]
    %v63 = vld [vmem:[#allocation5 + $0x30] sm:$0xff]
    %v64 = vld [vmem:[#allocation5 + $0x38] sm:$0xff]
    %v65 = vld [vmem:[#allocation5 + $0x40] sm:$0xff]
    %v66 = vld [vmem:[#allocation5 + $0x48] sm:$0xff]
    %v67 = vld [vmem:[#allocation5 + $0x50] sm:$0xff]
    %v68 = vld [vmem:[#allocation5 + $0x58] sm:$0xff]
    %v69 = vld [vmem:[#allocation5 + $0x60] sm:$0xff]
    %v70 = vld [vmem:[#allocation5 + $0x68] sm:$0xff]
    %v71 = vld [vmem:[#allocation5 + $0x70] sm:$0xff]
    %v72 = vld [vmem:[#allocation5 + $0x78] sm:$0xff]
    %v73 = vld [vmem:[#allocation5 + $0x80] sm:$0xff]
    %v74 = vld [vmem:[#allocation5 + $0x88] sm:$0xff]
    %v75 = vld [vmem:[#allocation5 + $0x90] sm:$0xff]
    %v76 = vld [vmem:[#allocation5 + $0x98] sm:$0xff]
    %v77 = vld [vmem:[#allocation5 + $0xa0] sm:$0xff]
    %v78 = vld [vmem:[#allocation5 + $0xa8] sm:$0xff]
    %v79 = vld [vmem:[#allocation5 + $0xb0] sm:$0xff]
    %v80 = vld [vmem:[#allocation5 + $0xb8] sm:$0xff]
    %v81 = vld [vmem:[#allocation5 + $0xc0] sm:$0xff]
    %v82 = vld [vmem:[#allocation5 + $0xc8] sm:$0xff]
    %v83 = vld [vmem:[#allocation5 + $0xd0] sm:$0xff]
    %v84 = vld [vmem:[#allocation5 + $0xd8] sm:$0xff]
    %v85 = vld [vmem:[#allocation5 + $0xe0] sm:$0xff]
    %v86 = vld [vmem:[#allocation5 + $0xe8] sm:$0xff]
    %v87 = vld [vmem:[#allocation5 + $0xf0] sm:$0xff]
    %v88 = vld [vmem:[#allocation5 + $0xf8] sm:$0xff]
    %v89 = vld [vmem:[#allocation5 + $0x100] sm:$0xff]
    %v90 = vld [vmem:[#allocation5 + $0x108] sm:$0xff]
    %v91 = vld [vmem:[#allocation5 + $0x110] sm:$0xff]
    %v92 = vld [vmem:[#allocation5 + $0x118] sm:$0xff]
    %v93 = vld [vmem:[#allocation5 + $0x120] sm:$0xff]
    %v94 = vld [vmem:[#allocation5 + $0x128] sm:$0xff]
    %v95 = vld [vmem:[#allocation5 + $0x130] sm:$0xff]
    %v96 = vld [vmem:[#allocation5 + $0x138] sm:$0xff]
    %v97 = vld [vmem:[#allocation5 + $0x140] sm:$0xff]
    %v98 = vld [vmem:[#allocation5 + $0x148] sm:$0xff]
    %v99 = vld [vmem:[#allocation5 + $0x150] sm:$0xff]
    %v100 = vld [vmem:[#allocation5 + $0x158] sm:$0xff]
    %v101 = vld [vmem:[#allocation5 + $0x160] sm:$0xff]
    %v102 = vld [vmem:[#allocation5 + $0x168] sm:$0xff]
    %v103 = vld [vmem:[#allocation5 + $0x170] sm:$0xff]
    %v104 = vld [vmem:[#allocation5 + $0x178] sm:$0xff]
    %v121 = vunpack.c.l.b16 %v41
    %v122 = vunpack.c.l.b16 %v42
    %v123 = vunpack.c.l.b16 %v43
    %v124 = vunpack.c.l.b16 %v44
    %v125 = vunpack.c.l.b16 %v45
    %v126 = vunpack.c.l.b16 %v46
    %v127 = vunpack.c.l.b16 %v47
    %v128 = vunpack.c.l.b16 %v48
    %v129 = vunpack.c.l.b16 %v49
    %v130 = vunpack.c.l.b16 %v50
    %v131 = vunpack.c.l.b16 %v51
    %v132 = vunpack.c.l.b16 %v52
    %v133 = vunpack.c.l.b16 %v53
    %v134 = vunpack.c.l.b16 %v54
    %v135 = vunpack.c.l.b16 %v55
    %v136 = vunpack.c.l.b16 %v56
    %v137 = vpack.c.b16 %v122, %v121
    %v138 = vpack.c.b16 %v124, %v123
    %v139 = vpack.c.b16 %v126, %v125
    %v140 = vpack.c.b16 %v128, %v127
    %v141 = vpack.c.b16 %v130, %v129
    %v142 = vpack.c.b16 %v132, %v131
    %v143 = vpack.c.b16 %v134, %v133
    %v144 = vpack.c.b16 %v136, %v135
    %v201 = vunpack.c.l.b16 %v57
    %v202 = vunpack.c.h.b16 %v57
    %v203 = vunpack.c.l.b16 %v58
    %v204 = vunpack.c.h.b16 %v58
    %v205 = vunpack.c.l.b16 %v59
    %v206 = vunpack.c.h.b16 %v59
    %v207 = vunpack.c.l.b16 %v60
    %v208 = vunpack.c.h.b16 %v60
    %v209 = vunpack.c.l.b16 %v61
    %v210 = vunpack.c.h.b16 %v61
    %v211 = vunpack.c.l.b16 %v62
    %v212 = vunpack.c.h.b16 %v62
    %v213 = vunpack.c.l.b16 %v63
    %v214 = vunpack.c.h.b16 %v63
    %v215 = vunpack.c.l.b16 %v64
    %v216 = vunpack.c.h.b16 %v64
    %v217 = vunpack.c.l.b16 %v65
    %v218 = vunpack.c.h.b16 %v65
    %v219 = vunpack.c.l.b16 %v66
    %v220 = vunpack.c.h.b16 %v66
    %v221 = vunpack.c.l.b16 %v67
    %v222 = vunpack.c.h.b16 %v67
    %v223 = vunpack.c.l.b16 %v68
    %v224 = vunpack.c.h.b16 %v68
    %v225 = vunpack.c.l.b16 %v69
    %v226 = vunpack.c.h.b16 %v69
    %v227 = vunpack.c.l.b16 %v70
    %v228 = vunpack.c.h.b16 %v70
    %v229 = vunpack.c.l.b16 %v71
    %v230 = vunpack.c.h.b16 %v71
    %v231 = vunpack.c.l.b16 %v72
    %v232 = vunpack.c.h.b16 %v72
    %v233 = vunpack.c.l.b16 %v73
    %v234 = vunpack.c.h.b16 %v73
    %v235 = vunpack.c.l.b16 %v74
    %v236 = vunpack.c.h.b16 %v74
    %v237 = vunpack.c.l.b16 %v75
    %v238 = vunpack.c.h.b16 %v75
    %v239 = vunpack.c.l.b16 %v76
    %v240 = vunpack.c.h.b16 %v76
    %v241 = vunpack.c.l.b16 %v77
    %v242 = vunpack.c.h.b16 %v77
    %v243 = vunpack.c.l.b16 %v78
    %v244 = vunpack.c.h.b16 %v78
    %v245 = vunpack.c.l.b16 %v79
    %v246 = vunpack.c.h.b16 %v79
    %v247 = vunpack.c.l.b16 %v80
    %v248 = vunpack.c.h.b16 %v80
    %v249 = vunpack.c.l.b16 %v81
    %v250 = vunpack.c.h.b16 %v81
    %v251 = vunpack.c.l.b16 %v82
    %v252 = vunpack.c.h.b16 %v82
    %v253 = vunpack.c.l.b16 %v83
    %v254 = vunpack.c.h.b16 %v83
    %v255 = vunpack.c.l.b16 %v84
    %v256 = vunpack.c.h.b16 %v84
    %v257 = vunpack.c.l.b16 %v85
    %v258 = vunpack.c.h.b16 %v85
    %v259 = vunpack.c.l.b16 %v86
    %v260 = vunpack.c.h.b16 %v86
    %v261 = vunpack.c.l.b16 %v87
    %v262 = vunpack.c.h.b16 %v87
    %v263 = vunpack.c.l.b16 %v88
    %v264 = vunpack.c.h.b16 %v88
    %v265 = vunpack.c.l.b16 %v89
    %v266 = vunpack.c.h.b16 %v89
    %v267 = vunpack.c.l.b16 %v90
    %v268 = vunpack.c.h.b16 %v90
    %v269 = vunpack.c.l.b16 %v91
    %v270 = vunpack.c.h.b16 %v91
    %v271 = vunpack.c.l.b16 %v92
    %v272 = vunpack.c.h.b16 %v92
    %v273 = vunpack.c.l.b16 %v93
    %v274 = vunpack.c.h.b16 %v93
    %v275 = vunpack.c.l.b16 %v94
    %v276 = vunpack.c.h.b16 %v94
    %v277 = vunpack.c.l.b16 %v95
    %v278 = vunpack.c.h.b16 %v95
    %v279 = vunpack.c.l.b16 %v96
    %v280 = vunpack.c.h.b16 %v96
    %v281 = vunpack.c.l.b16 %v97
    %v282 = vunpack.c.h.b16 %v97
    %v283 = vunpack.c.l.b16 %v98
    %v284 = vunpack.c.h.b16 %v98
    %v285 = vunpack.c.l.b16 %v99
    %v286 = vunpack.c.h.b16 %v99
    %v287 = vunpack.c.l.b16 %v100
    %v288 = vunpack.c.h.b16 %v100
    %v289 = vunpack.c.l.b16 %v101
    %v290 = vunpack.c.h.b16 %v101
    %v291 = vunpack.c.l.b16 %v102
    %v292 = vunpack.c.h.b16 %v102
    %v293 = vunpack.c.l.b16 %v103
    %v294 = vunpack.c.h.b16 %v103
    %v295 = vunpack.c.l.b16 %v104
    %v296 = vunpack.c.h.b16 %v104
    %v297 = vpack.c.b16 %v207, %v201
    %v298 = vpack.c.b16 %v208, %v202
    %v299 = vpack.c.b16 %v209, %v203
    %v300 = vpack.c.b16 %v210, %v204
    %v301 = vpack.c.b16 %v211, %v205
    %v302 = vpack.c.b16 %v212, %v206
    %v303 = vpack.c.b16 %v219, %v213
    %v304 = vpack.c.b16 %v220, %v214
    %v305 = vpack.c.b16 %v221, %v215
    %v306 = vpack.c.b16 %v222, %v216
    %v307 = vpack.c.b16 %v223, %v217
    %v308 = vpack.c.b16 %v224, %v218
    %v309 = vpack.c.b16 %v231, %v225
    %v310 = vpack.c.b16 %v232, %v226
    %v311 = vpack.c.b16 %v233, %v227
    %v312 = vpack.c.b16 %v234, %v228
    %v313 = vpack.c.b16 %v235, %v229
    %v314 = vpack.c.b16 %v236, %v230
    %v315 = vpack.c.b16 %v243, %v237
    %v316 = vpack.c.b16 %v244, %v238
    %v317 = vpack.c.b16 %v245, %v239
    %v318 = vpack.c.b16 %v246, %v240
    %v319 = vpack.c.b16 %v247, %v241
    %v320 = vpack.c.b16 %v248, %v242
    %v321 = vpack.c.b16 %v255, %v249
    %v322 = vpack.c.b16 %v256, %v250
    %v323 = vpack.c.b16 %v257, %v251
    %v324 = vpack.c.b16 %v258, %v252
    %v325 = vpack.c.b16 %v259, %v253
    %v326 = vpack.c.b16 %v260, %v254
    %v327 = vpack.c.b16 %v267, %v261
    %v328 = vpack.c.b16 %v268, %v262
    %v329 = vpack.c.b16 %v269, %v263
    %v330 = vpack.c.b16 %v270, %v264
    %v331 = vpack.c.b16 %v271, %v265
    %v332 = vpack.c.b16 %v272, %v266
    %v333 = vpack.c.b16 %v279, %v273
    %v334 = vpack.c.b16 %v280, %v274
    %v335 = vpack.c.b16 %v281, %v275
    %v336 = vpack.c.b16 %v282, %v276
    %v337 = vpack.c.b16 %v283, %v277
    %v338 = vpack.c.b16 %v284, %v278
    %v339 = vpack.c.b16 %v291, %v285
    %v340 = vpack.c.b16 %v292, %v286
    %v341 = vpack.c.b16 %v293, %v287
    %v342 = vpack.c.b16 %v294, %v288
    %v343 = vpack.c.b16 %v295, %v289
    %v344 = vpack.c.b16 %v296, %v290
    %393 = vmatprep.subr.bf16.mxu0 %v340
    %394 = vmatpush1.bf16.msra.mxu0 %v339
    %395 = vmatprep.subr.bf16.mxu0 %v334
    %396 = vmatpush1.bf16.msra.mxu0 %v333
    %397 = vmatprep.subr.bf16.mxu0 %v328
    %398 = vmatpush1.bf16.msra.mxu0 %v327
    %399 = vmatprep.subr.bf16.mxu0 %v322
    %400 = vmatpush1.bf16.msra.mxu0 %v321
    %401 = vmatprep.subr.bf16.mxu0 %v316
    %402 = vmatpush1.bf16.msra.mxu0 %v315
    %403 = vmatprep.subr.bf16.mxu0 %v310
    %404 = vmatpush1.bf16.msra.mxu0 %v309
    %405 = vmatprep.subr.bf16.mxu0 %v304
    %406 = vmatpush1.bf16.msra.mxu0 %v303
    %407 = vmatprep.subr.bf16.mxu0 %v298
    %408 = vmatpush1.bf16.msra.mxu0 %v297
    %409 = vmatprep.subr.bf16.mxu0 0
    %410 = vmatpush2.bf16.msra.mxu0 0
    %411 = vmatprep.subr.bf16.mxu0 0
    %412 = vmatpush2.bf16.msra.mxu0 0
    %413 = vmatprep.subr.bf16.mxu0 0
    %414 = vmatpush2.bf16.msra.mxu0 0
    %415 = vmatprep.subr.bf16.mxu0 0
    %416 = vmatpush2.bf16.msra.mxu0 0
    %417 = vmatprep.subr.bf16.mxu0 0
    %418 = vmatpush2.bf16.msra.mxu0 0
    %419 = vmatprep.subr.bf16.mxu0 0
    %420 = vmatpush2.bf16.msra.mxu0 0
    %421 = vmatprep.subr.bf16.mxu0 0
    %422 = vmatpush2.bf16.msra.mxu0 0
    %423 = vmatprep.subr.bf16.mxu0 0
    %424 = vmatpush2.bf16.msra.mxu0 0
    %425 = vmatprep.mubr.bf16.mxu0 0
    %426 = vmatmul.mubr.bf16.gmra.mxu0 %v137
    %v427 = vpop.f32.mrf.mxu0
    %v428 = vadd.f32 0.0, %v427
    %v429 = vpop.f32.mrf.mxu0
    %v430 = vadd.f32 0.0, %v429
    %v431 = vpop.f32.mrf.mxu0
    %v432 = vadd.f32 0.0, %v431
    %v433 = vpop.f32.mrf.mxu0
    %v434 = vadd.f32 0.0, %v433
    %435 = vmatprep.mubr.bf16.mxu0 0
    %436 = vmatmul.mubr.bf16.gmra.mxu0 %v138
    %v437 = vpop.f32.mrf.mxu0
    %v438 = vadd.f32 0.0, %v437
    %v439 = vpop.f32.mrf.mxu0
    %v440 = vadd.f32 0.0, %v439
    %v441 = vpop.f32.mrf.mxu0
    %v442 = vadd.f32 0.0, %v441
    %v443 = vpop.f32.mrf.mxu0
    %v444 = vadd.f32 0.0, %v443
    %445 = vmatprep.mubr.bf16.mxu0 0
    %446 = vmatmul.mubr.bf16.gmra.mxu0 %v139
    %v447 = vpop.f32.mrf.mxu0
    %v448 = vadd.f32 0.0, %v447
    %v449 = vpop.f32.mrf.mxu0
    %v450 = vadd.f32 0.0, %v449
    %v451 = vpop.f32.mrf.mxu0
    %v452 = vadd.f32 0.0, %v451
    %v453 = vpop.f32.mrf.mxu0
    %v454 = vadd.f32 0.0, %v453
    %455 = vmatprep.mubr.bf16.mxu0 0
    %456 = vmatmul.mubr.bf16.gmra.mxu0 %v140
    %v457 = vpop.f32.mrf.mxu0
    %v458 = vadd.f32 0.0, %v457
    %v459 = vpop.f32.mrf.mxu0
    %v460 = vadd.f32 0.0, %v459
    %v461 = vpop.f32.mrf.mxu0
    %v462 = vadd.f32 0.0, %v461
    %v463 = vpop.f32.mrf.mxu0
    %v464 = vadd.f32 0.0, %v463
    %465 = vmatprep.mubr.bf16.mxu0 0
    %466 = vmatmul.mubr.bf16.gmra.mxu0 %v141
    %v467 = vpop.f32.mrf.mxu0
    %v468 = vadd.f32 0.0, %v467
    %v469 = vpop.f32.mrf.mxu0
    %v470 = vadd.f32 0.0, %v469
    %v471 = vpop.f32.mrf.mxu0
    %v472 = vadd.f32 0.0, %v471
    %v473 = vpop.f32.mrf.mxu0
    %v474 = vadd.f32 0.0, %v473
    %475 = vmatprep.mubr.bf16.mxu0 0
    %476 = vmatmul.mubr.bf16.gmra.mxu0 %v142
    %v477 = vpop.f32.mrf.mxu0
    %v478 = vadd.f32 0.0, %v477
    %v479 = vpop.f32.mrf.mxu0
    %v480 = vadd.f32 0.0, %v479
    %v481 = vpop.f32.mrf.mxu0
    %v482 = vadd.f32 0.0, %v481
    %v483 = vpop.f32.mrf.mxu0
    %v484 = vadd.f32 0.0, %v483
    %485 = vmatprep.mubr.bf16.mxu0 0
    %486 = vmatmul.mubr.bf16.gmra.mxu0 %v143
    %v487 = vpop.f32.mrf.mxu0
    %v488 = vadd.f32 0.0, %v487
    %v489 = vpop.f32.mrf.mxu0
    %v490 = vadd.f32 0.0, %v489
    %v491 = vpop.f32.mrf.mxu0
    %v492 = vadd.f32 0.0, %v491
    %v493 = vpop.f32.mrf.mxu0
    %v494 = vadd.f32 0.0, %v493
    %495 = vmatprep.mubr.bf16.mxu0 0
    %496 = vmatmul.mubr.bf16.gmra.mxu0 %v144
    %v497 = vpop.f32.mrf.mxu0
    %v498 = vadd.f32 0.0, %v497
    %v499 = vpop.f32.mrf.mxu0
    %v500 = vadd.f32 0.0, %v499
    %v501 = vpop.f32.mrf.mxu0
    %v502 = vadd.f32 0.0, %v501
    %v503 = vpop.f32.mrf.mxu0
    %v504 = vadd.f32 0.0, %v503
    %505 = vdwg.mxu0
    %506 = vmatprep.subr.bf16.mxu0 %v342
    %507 = vmatpush1.bf16.msra.mxu0 %v341
    %508 = vmatprep.subr.bf16.mxu0 %v336
    %509 = vmatpush1.bf16.msra.mxu0 %v335
    %510 = vmatprep.subr.bf16.mxu0 %v330
    %511 = vmatpush1.bf16.msra.mxu0 %v329
    %512 = vmatprep.subr.bf16.mxu0 %v324
    %513 = vmatpush1.bf16.msra.mxu0 %v323
    %514 = vmatprep.subr.bf16.mxu0 %v318
    %515 = vmatpush1.bf16.msra.mxu0 %v317
    %516 = vmatprep.subr.bf16.mxu0 %v312
    %517 = vmatpush1.bf16.msra.mxu0 %v311
    %518 = vmatprep.subr.bf16.mxu0 %v306
    %519 = vmatpush1.bf16.msra.mxu0 %v305
    %520 = vmatprep.subr.bf16.mxu0 %v300
    %521 = vmatpush1.bf16.msra.mxu0 %v299
    %522 = vmatprep.subr.bf16.mxu0 0
    %523 = vmatpush2.bf16.msra.mxu0 0
    %524 = vmatprep.subr.bf16.mxu0 0
    %525 = vmatpush2.bf16.msra.mxu0 0
    %526 = vmatprep.subr.bf16.mxu0 0
    %527 = vmatpush2.bf16.msra.mxu0 0
    %528 = vmatprep.subr.bf16.mxu0 0
    %529 = vmatpush2.bf16.msra.mxu0 0
    %530 = vmatprep.subr.bf16.mxu0 0
    %531 = vmatpush2.bf16.msra.mxu0 0
    %532 = vmatprep.subr.bf16.mxu0 0
    %533 = vmatpush2.bf16.msra.mxu0 0
    %534 = vmatprep.subr.bf16.mxu0 0
    %535 = vmatpush2.bf16.msra.mxu0 0
    %536 = vmatprep.subr.bf16.mxu0 0
    %537 = vmatpush2.bf16.msra.mxu0 0
    %538 = vmatprep.mubr.bf16.mxu0 0
    %539 = vmatmul.mubr.bf16.gmra.mxu0 %v137
    %v540 = vpop.f32.mrf.mxu0
    %v541 = vadd.f32 0.0, %v540
    %v542 = vpop.f32.mrf.mxu0
    %v543 = vadd.f32 0.0, %v542
    %v544 = vpop.f32.mrf.mxu0
    %v545 = vadd.f32 0.0, %v544
    %v546 = vpop.f32.mrf.mxu0
    %v547 = vadd.f32 0.0, %v546
    %548 = vmatprep.mubr.bf16.mxu0 0
    %549 = vmatmul.mubr.bf16.gmra.mxu0 %v138
    %v550 = vpop.f32.mrf.mxu0
    %v551 = vadd.f32 0.0, %v550
    %v552 = vpop.f32.mrf.mxu0
    %v553 = vadd.f32 0.0, %v552
    %v554 = vpop.f32.mrf.mxu0
    %v555 = vadd.f32 0.0, %v554
    %v556 = vpop.f32.mrf.mxu0
    %v557 = vadd.f32 0.0, %v556
    %558 = vmatprep.mubr.bf16.mxu0 0
    %559 = vmatmul.mubr.bf16.gmra.mxu0 %v139
    %v560 = vpop.f32.mrf.mxu0
    %v561 = vadd.f32 0.0, %v560
    %v562 = vpop.f32.mrf.mxu0
    %v563 = vadd.f32 0.0, %v562
    %v564 = vpop.f32.mrf.mxu0
    %v565 = vadd.f32 0.0, %v564
    %v566 = vpop.f32.mrf.mxu0
    %v567 = vadd.f32 0.0, %v566
    %568 = vmatprep.mubr.bf16.mxu0 0
    %569 = vmatmul.mubr.bf16.gmra.mxu0 %v140
    %v570 = vpop.f32.mrf.mxu0
    %v571 = vadd.f32 0.0, %v570
    %v572 = vpop.f32.mrf.mxu0
    %v573 = vadd.f32 0.0, %v572
    %v574 = vpop.f32.mrf.mxu0
    %v575 = vadd.f32 0.0, %v574
    %v576 = vpop.f32.mrf.mxu0
    %v577 = vadd.f32 0.0, %v576
    %578 = vmatprep.mubr.bf16.mxu0 0
    %579 = vmatmul.mubr.bf16.gmra.mxu0 %v141
    %v580 = vpop.f32.mrf.mxu0
    %v581 = vadd.f32 0.0, %v580
    %v582 = vpop.f32.mrf.mxu0
    %v583 = vadd.f32 0.0, %v582
    %v584 = vpop.f32.mrf.mxu0
    %v585 = vadd.f32 0.0, %v584
    %v586 = vpop.f32.mrf.mxu0
    %v587 = vadd.f32 0.0, %v586
    %588 = vmatprep.mubr.bf16.mxu0 0
    %589 = vmatmul.mubr.bf16.gmra.mxu0 %v142
    %v590 = vpop.f32.mrf.mxu0
    %v591 = vadd.f32 0.0, %v590
    %v592 = vpop.f32.mrf.mxu0
    %v593 = vadd.f32 0.0, %v592
    %v594 = vpop.f32.mrf.mxu0
    %v595 = vadd.f32 0.0, %v594
    %v596 = vpop.f32.mrf.mxu0
    %v597 = vadd.f32 0.0, %v596
    %598 = vmatprep.mubr.bf16.mxu0 0
    %599 = vmatmul.mubr.bf16.gmra.mxu0 %v143
    %v600 = vpop.f32.mrf.mxu0
    %v601 = vadd.f32 0.0, %v600
    %v602 = vpop.f32.mrf.mxu0
    %v603 = vadd.f32 0.0, %v602
    %v604 = vpop.f32.mrf.mxu0
    %v605 = vadd.f32 0.0, %v604
    %v606 = vpop.f32.mrf.mxu0
    %v607 = vadd.f32 0.0, %v606
    %608 = vmatprep.mubr.bf16.mxu0 0
    %609 = vmatmul.mubr.bf16.gmra.mxu0 %v144
    %v610 = vpop.f32.mrf.mxu0
    %v611 = vadd.f32 0.0, %v610
    %v612 = vpop.f32.mrf.mxu0
    %v613 = vadd.f32 0.0, %v612
    %v614 = vpop.f32.mrf.mxu0
    %v615 = vadd.f32 0.0, %v614
    %v616 = vpop.f32.mrf.mxu0
    %v617 = vadd.f32 0.0, %v616
    %618 = vdwg.mxu0
    %619 = vmatprep.subr.bf16.mxu0 %v344
    %620 = vmatpush1.bf16.msra.mxu0 %v343
    %621 = vmatprep.subr.bf16.mxu0 %v338
    %622 = vmatpush1.bf16.msra.mxu0 %v337
    %623 = vmatprep.subr.bf16.mxu0 %v332
    %624 = vmatpush1.bf16.msra.mxu0 %v331
    %625 = vmatprep.subr.bf16.mxu0 %v326
    %626 = vmatpush1.bf16.msra.mxu0 %v325
    %627 = vmatprep.subr.bf16.mxu0 %v320
    %628 = vmatpush1.bf16.msra.mxu0 %v319
    %629 = vmatprep.subr.bf16.mxu0 %v314
    %630 = vmatpush1.bf16.msra.mxu0 %v313
    %631 = vmatprep.subr.bf16.mxu0 %v308
    %632 = vmatpush1.bf16.msra.mxu0 %v307
    %633 = vmatprep.subr.bf16.mxu0 %v302
    %634 = vmatpush1.bf16.msra.mxu0 %v301
    %635 = vmatprep.subr.bf16.mxu0 0
    %636 = vmatpush2.bf16.msra.mxu0 0
    %637 = vmatprep.subr.bf16.mxu0 0
    %638 = vmatpush2.bf16.msra.mxu0 0
    %639 = vmatprep.subr.bf16.mxu0 0
    %640 = vmatpush2.bf16.msra.mxu0 0
    %641 = vmatprep.subr.bf16.mxu0 0
    %642 = vmatpush2.bf16.msra.mxu0 0
    %643 = vmatprep.subr.bf16.mxu0 0
    %644 = vmatpush2.bf16.msra.mxu0 0
    %645 = vmatprep.subr.bf16.mxu0 0
    %646 = vmatpush2.bf16.msra.mxu0 0
    %647 = vmatprep.subr.bf16.mxu0 0
    %648 = vmatpush2.bf16.msra.mxu0 0
    %649 = vmatprep.subr.bf16.mxu0 0
    %650 = vmatpush2.bf16.msra.mxu0 0
    %651 = vmatprep.mubr.bf16.mxu0 0
    %652 = vmatmul.mubr.bf16.gmra.mxu0 %v137
    %v653 = vpop.f32.mrf.mxu0
    %v654 = vadd.f32 0.0, %v653
    %v655 = vpop.f32.mrf.mxu0
    %v656 = vadd.f32 0.0, %v655
    %v657 = vpop.f32.mrf.mxu0
    %v658 = vadd.f32 0.0, %v657
    %v659 = vpop.f32.mrf.mxu0
    %v660 = vadd.f32 0.0, %v659
    %661 = vmatprep.mubr.bf16.mxu0 0
    %662 = vmatmul.mubr.bf16.gmra.mxu0 %v138
    %v663 = vpop.f32.mrf.mxu0
    %v664 = vadd.f32 0.0, %v663
    %v665 = vpop.f32.mrf.mxu0
    %v666 = vadd.f32 0.0, %v665
    %v667 = vpop.f32.mrf.mxu0
    %v668 = vadd.f32 0.0, %v667
    %v669 = vpop.f32.mrf.mxu0
    %v670 = vadd.f32 0.0, %v669
    %671 = vmatprep.mubr.bf16.mxu0 0
    %672 = vmatmul.mubr.bf16.gmra.mxu0 %v139
    %v673 = vpop.f32.mrf.mxu0
    %v674 = vadd.f32 0.0, %v673
    %v675 = vpop.f32.mrf.mxu0
    %v676 = vadd.f32 0.0, %v675
    %v677 = vpop.f32.mrf.mxu0
    %v678 = vadd.f32 0.0, %v677
    %v679 = vpop.f32.mrf.mxu0
    %v680 = vadd.f32 0.0, %v679
    %681 = vmatprep.mubr.bf16.mxu0 0
    %682 = vmatmul.mubr.bf16.gmra.mxu0 %v140
    %v683 = vpop.f32.mrf.mxu0
    %v684 = vadd.f32 0.0, %v683
    %v685 = vpop.f32.mrf.mxu0
    %v686 = vadd.f32 0.0, %v685
    %v687 = vpop.f32.mrf.mxu0
    %v688 = vadd.f32 0.0, %v687
    %v689 = vpop.f32.mrf.mxu0
    %v690 = vadd.f32 0.0, %v689
    %691 = vmatprep.mubr.bf16.mxu0 0
    %692 = vmatmul.mubr.bf16.gmra.mxu0 %v141
    %v693 = vpop.f32.mrf.mxu0
    %v694 = vadd.f32 0.0, %v693
    %v695 = vpop.f32.mrf.mxu0
    %v696 = vadd.f32 0.0, %v695
    %v697 = vpop.f32.mrf.mxu0
    %v698 = vadd.f32 0.0, %v697
    %v699 = vpop.f32.mrf.mxu0
    %v700 = vadd.f32 0.0, %v699
    %701 = vmatprep.mubr.bf16.mxu0 0
    %702 = vmatmul.mubr.bf16.gmra.mxu0 %v142
    %v703 = vpop.f32.mrf.mxu0
    %v704 = vadd.f32 0.0, %v703
    %v705 = vpop.f32.mrf.mxu0
    %v706 = vadd.f32 0.0, %v705
    %v707 = vpop.f32.mrf.mxu0
    %v708 = vadd.f32 0.0, %v707
    %v709 = vpop.f32.mrf.mxu0
    %v710 = vadd.f32 0.0, %v709
    %711 = vmatprep.mubr.bf16.mxu0 0
    %712 = vmatmul.mubr.bf16.gmra.mxu0 %v143
    %v713 = vpop.f32.mrf.mxu0
    %v714 = vadd.f32 0.0, %v713
    %v715 = vpop.f32.mrf.mxu0
    %v716 = vadd.f32 0.0, %v715
    %v717 = vpop.f32.mrf.mxu0
    %v718 = vadd.f32 0.0, %v717
    %v719 = vpop.f32.mrf.mxu0
    %v720 = vadd.f32 0.0, %v719
    %721 = vmatprep.mubr.bf16.mxu0 0
    %722 = vmatmul.mubr.bf16.gmra.mxu0 %v144
    %v723 = vpop.f32.mrf.mxu0
    %v724 = vadd.f32 0.0, %v723
    %v725 = vpop.f32.mrf.mxu0
    %v726 = vadd.f32 0.0, %v725
    %v727 = vpop.f32.mrf.mxu0
    %v728 = vadd.f32 0.0, %v727
    %v729 = vpop.f32.mrf.mxu0
    %v730 = vadd.f32 0.0, %v729
    %731 = vdwg.mxu0
    %v732 = vpack.c.bf16 %v432, %v428
    %v733 = vpack.c.bf16 %v442, %v438
    %v734 = vpack.c.bf16 %v452, %v448
    %v735 = vpack.c.bf16 %v462, %v458
    %v736 = vpack.c.bf16 %v472, %v468
    %v737 = vpack.c.bf16 %v482, %v478
    %v738 = vpack.c.bf16 %v492, %v488
    %v739 = vpack.c.bf16 %v502, %v498
    %v748 = vunpack.c.l.b16 %v732
    %v749 = vunpack.c.h.b16 %v732
    %v750 = vunpack.c.l.b16 %v733
    %v751 = vunpack.c.h.b16 %v733
    %v752 = vunpack.c.l.b16 %v734
    %v753 = vunpack.c.h.b16 %v734
    %v754 = vunpack.c.l.b16 %v735
    %v755 = vunpack.c.h.b16 %v735
    %v756 = vunpack.c.l.b16 %v736
    %v757 = vunpack.c.h.b16 %v736
    %v758 = vunpack.c.l.b16 %v737
    %v759 = vunpack.c.h.b16 %v737
    %v760 = vunpack.c.l.b16 %v738
    %v761 = vunpack.c.h.b16 %v738
    %v762 = vunpack.c.l.b16 %v739
    %v763 = vunpack.c.h.b16 %v739
    %v764 = vpack.c.b16 %v748, %v748
    %v765 = vpack.c.b16 %v749, %v749
    %v766 = vpack.c.b16 %v750, %v750
    %v767 = vpack.c.b16 %v751, %v751
    %v768 = vpack.c.b16 %v752, %v752
    %v769 = vpack.c.b16 %v753, %v753
    %v770 = vpack.c.b16 %v754, %v754
    %v771 = vpack.c.b16 %v755, %v755
    %v772 = vpack.c.b16 %v756, %v756
    %v773 = vpack.c.b16 %v757, %v757
    %v774 = vpack.c.b16 %v758, %v758
    %v775 = vpack.c.b16 %v759, %v759
    %v776 = vpack.c.b16 %v760, %v760
    %v777 = vpack.c.b16 %v761, %v761
    %v778 = vpack.c.b16 %v762, %v762
    %v779 = vpack.c.b16 %v763, %v763
    %796 = vst [vmem:[#allocation7] sm:$0xf] %v764
    %797 = vst [vmem:[#allocation7 + $0x4] sm:$0xf] %v765
    %798 = vst [vmem:[#allocation7 + $0x8] sm:$0xf] %v766
    %799 = vst [vmem:[#allocation7 + $0xc] sm:$0xf] %v767
    %800 = vst [vmem:[#allocation7 + $0x10] sm:$0xf] %v768
    %801 = vst [vmem:[#allocation7 + $0x14] sm:$0xf] %v769
    %802 = vst [vmem:[#allocation7 + $0x18] sm:$0xf] %v770
    %803 = vst [vmem:[#allocation7 + $0x1c] sm:$0xf] %v771
    %804 = vst [vmem:[#allocation7 + $0x20] sm:$0xf] %v772
    %805 = vst [vmem:[#allocation7 + $0x24] sm:$0xf] %v773
    %806 = vst [vmem:[#allocation7 + $0x28] sm:$0xf] %v774
    %807 = vst [vmem:[#allocation7 + $0x2c] sm:$0xf] %v775
    %808 = vst [vmem:[#allocation7 + $0x30] sm:$0xf] %v776
    %809 = vst [vmem:[#allocation7 + $0x34] sm:$0xf] %v777
    %810 = vst [vmem:[#allocation7 + $0x38] sm:$0xf] %v778
    %811 = vst [vmem:[#allocation7 + $0x3c] sm:$0xf] %v779
    %v812 = vpack.c.bf16 %v434, %v430
    %v813 = vpack.c.bf16 %v444, %v440
    %v814 = vpack.c.bf16 %v454, %v450
    %v815 = vpack.c.bf16 %v464, %v460
    %v816 = vpack.c.bf16 %v474, %v470
    %v817 = vpack.c.bf16 %v484, %v480
    %v818 = vpack.c.bf16 %v494, %v490
    %v819 = vpack.c.bf16 %v504, %v500
    %v828 = vunpack.c.l.b16 %v812
    %v829 = vunpack.c.h.b16 %v812
    %v830 = vunpack.c.l.b16 %v813
    %v831 = vunpack.c.h.b16 %v813
    %v832 = vunpack.c.l.b16 %v814
    %v833 = vunpack.c.h.b16 %v814
    %v834 = vunpack.c.l.b16 %v815
    %v835 = vunpack.c.h.b16 %v815
    %v836 = vunpack.c.l.b16 %v816
    %v837 = vunpack.c.h.b16 %v816
    %v838 = vunpack.c.l.b16 %v817
    %v839 = vunpack.c.h.b16 %v817
    %v840 = vunpack.c.l.b16 %v818
    %v841 = vunpack.c.h.b16 %v818
    %v842 = vunpack.c.l.b16 %v819
    %v843 = vunpack.c.h.b16 %v819
    %v844 = vpack.c.b16 %v828, %v828
    %v845 = vpack.c.b16 %v829, %v829
    %v846 = vpack.c.b16 %v830, %v830
    %v847 = vpack.c.b16 %v831, %v831
    %v848 = vpack.c.b16 %v832, %v832
    %v849 = vpack.c.b16 %v833, %v833
    %v850 = vpack.c.b16 %v834, %v834
    %v851 = vpack.c.b16 %v835, %v835
    %v852 = vpack.c.b16 %v836, %v836
    %v853 = vpack.c.b16 %v837, %v837
    %v854 = vpack.c.b16 %v838, %v838
    %v855 = vpack.c.b16 %v839, %v839
    %v856 = vpack.c.b16 %v840, %v840
    %v857 = vpack.c.b16 %v841, %v841
    %v858 = vpack.c.b16 %v842, %v842
    %v859 = vpack.c.b16 %v843, %v843
    %s876 = scalar_lea.vmem [#allocation7], 64
    %877 = vst [vmem:[%s876] sm:$0xf] %v844
    %878 = vst [vmem:[%s876 + $0x4] sm:$0xf] %v845
    %879 = vst [vmem:[%s876 + $0x8] sm:$0xf] %v846
    %880 = vst [vmem:[%s876 + $0xc] sm:$0xf] %v847
    %881 = vst [vmem:[%s876 + $0x10] sm:$0xf] %v848
    %882 = vst [vmem:[%s876 + $0x14] sm:$0xf] %v849
    %883 = vst [vmem:[%s876 + $0x18] sm:$0xf] %v850
    %884 = vst [vmem:[%s876 + $0x1c] sm:$0xf] %v851
    %885 = vst [vmem:[%s876 + $0x20] sm:$0xf] %v852
    %886 = vst [vmem:[%s876 + $0x24] sm:$0xf] %v853
    %887 = vst [vmem:[%s876 + $0x28] sm:$0xf] %v854
    %888 = vst [vmem:[%s876 + $0x2c] sm:$0xf] %v855
    %889 = vst [vmem:[%s876 + $0x30] sm:$0xf] %v856
    %890 = vst [vmem:[%s876 + $0x34] sm:$0xf] %v857
    %891 = vst [vmem:[%s876 + $0x38] sm:$0xf] %v858
    %892 = vst [vmem:[%s876 + $0x3c] sm:$0xf] %v859
    %v893 = vpack.c.bf16 %v545, %v541
    %v894 = vpack.c.bf16 %v555, %v551
    %v895 = vpack.c.bf16 %v565, %v561
    %v896 = vpack.c.bf16 %v575, %v571
    %v897 = vpack.c.bf16 %v585, %v581
    %v898 = vpack.c.bf16 %v595, %v591
    %v899 = vpack.c.bf16 %v605, %v601
    %v900 = vpack.c.bf16 %v615, %v611
    %v909 = vunpack.c.l.b16 %v893
    %v910 = vunpack.c.h.b16 %v893
    %v911 = vunpack.c.l.b16 %v894
    %v912 = vunpack.c.h.b16 %v894
    %v913 = vunpack.c.l.b16 %v895
    %v914 = vunpack.c.h.b16 %v895
    %v915 = vunpack.c.l.b16 %v896
    %v916 = vunpack.c.h.b16 %v896
    %v917 = vunpack.c.l.b16 %v897
    %v918 = vunpack.c.h.b16 %v897
    %v919 = vunpack.c.l.b16 %v898
    %v920 = vunpack.c.h.b16 %v898
    %v921 = vunpack.c.l.b16 %v899
    %v922 = vunpack.c.h.b16 %v899
    %v923 = vunpack.c.l.b16 %v900
    %v924 = vunpack.c.h.b16 %v900
    %v925 = vpack.c.b16 %v909, %v909
    %v926 = vpack.c.b16 %v910, %v910
    %v927 = vpack.c.b16 %v911, %v911
    %v928 = vpack.c.b16 %v912, %v912
    %v929 = vpack.c.b16 %v913, %v913
    %v930 = vpack.c.b16 %v914, %v914
    %v931 = vpack.c.b16 %v915, %v915
    %v932 = vpack.c.b16 %v916, %v916
    %v933 = vpack.c.b16 %v917, %v917
    %v934 = vpack.c.b16 %v918, %v918
    %v935 = vpack.c.b16 %v919, %v919
    %v936 = vpack.c.b16 %v920, %v920
    %v937 = vpack.c.b16 %v921, %v921
    %v938 = vpack.c.b16 %v922, %v922
    %v939 = vpack.c.b16 %v923, %v923
    %v940 = vpack.c.b16 %v924, %v924
    %s957 = scalar_lea.vmem [#allocation7], 128
    %958 = vst [vmem:[%s957] sm:$0xf] %v925
    %959 = vst [vmem:[%s957 + $0x4] sm:$0xf] %v926
    %960 = vst [vmem:[%s957 + $0x8] sm:$0xf] %v927
    %961 = vst [vmem:[%s957 + $0xc] sm:$0xf] %v928
    %962 = vst [vmem:[%s957 + $0x10] sm:$0xf] %v929
    %963 = vst [vmem:[%s957 + $0x14] sm:$0xf] %v930
    %964 = vst [vmem:[%s957 + $0x18] sm:$0xf] %v931
    %965 = vst [vmem:[%s957 + $0x1c] sm:$0xf] %v932
    %966 = vst [vmem:[%s957 + $0x20] sm:$0xf] %v933
    %967 = vst [vmem:[%s957 + $0x24] sm:$0xf] %v934
    %968 = vst [vmem:[%s957 + $0x28] sm:$0xf] %v935
    %969 = vst [vmem:[%s957 + $0x2c] sm:$0xf] %v936
    %970 = vst [vmem:[%s957 + $0x30] sm:$0xf] %v937
    %971 = vst [vmem:[%s957 + $0x34] sm:$0xf] %v938
    %972 = vst [vmem:[%s957 + $0x38] sm:$0xf] %v939
    %973 = vst [vmem:[%s957 + $0x3c] sm:$0xf] %v940
    %v974 = vpack.c.bf16 %v547, %v543
    %v975 = vpack.c.bf16 %v557, %v553
    %v976 = vpack.c.bf16 %v567, %v563
    %v977 = vpack.c.bf16 %v577, %v573
    %v978 = vpack.c.bf16 %v587, %v583
    %v979 = vpack.c.bf16 %v597, %v593
    %v980 = vpack.c.bf16 %v607, %v603
    %v981 = vpack.c.bf16 %v617, %v613
    %v990 = vunpack.c.l.b16 %v974
    %v991 = vunpack.c.h.b16 %v974
    %v992 = vunpack.c.l.b16 %v975
    %v993 = vunpack.c.h.b16 %v975
    %v994 = vunpack.c.l.b16 %v976
    %v995 = vunpack.c.h.b16 %v976
    %v996 = vunpack.c.l.b16 %v977
    %v997 = vunpack.c.h.b16 %v977
    %v998 = vunpack.c.l.b16 %v978
    %v999 = vunpack.c.h.b16 %v978
    %v1000 = vunpack.c.l.b16 %v979
    %v1001 = vunpack.c.h.b16 %v979
    %v1002 = vunpack.c.l.b16 %v980
    %v1003 = vunpack.c.h.b16 %v980
    %v1004 = vunpack.c.l.b16 %v981
    %v1005 = vunpack.c.h.b16 %v981
    %v1006 = vpack.c.b16 %v990, %v990
    %v1007 = vpack.c.b16 %v991, %v991
    %v1008 = vpack.c.b16 %v992, %v992
    %v1009 = vpack.c.b16 %v993, %v993
    %v1010 = vpack.c.b16 %v994, %v994
    %v1011 = vpack.c.b16 %v995, %v995
    %v1012 = vpack.c.b16 %v996, %v996
    %v1013 = vpack.c.b16 %v997, %v997
    %v1014 = vpack.c.b16 %v998, %v998
    %v1015 = vpack.c.b16 %v999, %v999
    %v1016 = vpack.c.b16 %v1000, %v1000
    %v1017 = vpack.c.b16 %v1001, %v1001
    %v1018 = vpack.c.b16 %v1002, %v1002
    %v1019 = vpack.c.b16 %v1003, %v1003
    %v1020 = vpack.c.b16 %v1004, %v1004
    %v1021 = vpack.c.b16 %v1005, %v1005
    %s1038 = scalar_lea.vmem [#allocation7], 192
    %1039 = vst [vmem:[%s1038] sm:$0xf] %v1006
    %1040 = vst [vmem:[%s1038 + $0x4] sm:$0xf] %v1007
    %1041 = vst [vmem:[%s1038 + $0x8] sm:$0xf] %v1008
    %1042 = vst [vmem:[%s1038 + $0xc] sm:$0xf] %v1009
    %1043 = vst [vmem:[%s1038 + $0x10] sm:$0xf] %v1010
    %1044 = vst [vmem:[%s1038 + $0x14] sm:$0xf] %v1011
    %1045 = vst [vmem:[%s1038 + $0x18] sm:$0xf] %v1012
    %1046 = vst [vmem:[%s1038 + $0x1c] sm:$0xf] %v1013
    %1047 = vst [vmem:[%s1038 + $0x20] sm:$0xf] %v1014
    %1048 = vst [vmem:[%s1038 + $0x24] sm:$0xf] %v1015
    %1049 = vst [vmem:[%s1038 + $0x28] sm:$0xf] %v1016
    %1050 = vst [vmem:[%s1038 + $0x2c] sm:$0xf] %v1017
    %1051 = vst [vmem:[%s1038 + $0x30] sm:$0xf] %v1018
    %1052 = vst [vmem:[%s1038 + $0x34] sm:$0xf] %v1019
    %1053 = vst [vmem:[%s1038 + $0x38] sm:$0xf] %v1020
    %1054 = vst [vmem:[%s1038 + $0x3c] sm:$0xf] %v1021
    %v1055 = vpack.c.bf16 %v658, %v654
    %v1056 = vpack.c.bf16 %v668, %v664
    %v1057 = vpack.c.bf16 %v678, %v674
    %v1058 = vpack.c.bf16 %v688, %v684
    %v1059 = vpack.c.bf16 %v698, %v694
    %v1060 = vpack.c.bf16 %v708, %v704
    %v1061 = vpack.c.bf16 %v718, %v714
    %v1062 = vpack.c.bf16 %v728, %v724
    %v1071 = vunpack.c.l.b16 %v1055
    %v1072 = vunpack.c.h.b16 %v1055
    %v1073 = vunpack.c.l.b16 %v1056
    %v1074 = vunpack.c.h.b16 %v1056
    %v1075 = vunpack.c.l.b16 %v1057
    %v1076 = vunpack.c.h.b16 %v1057
    %v1077 = vunpack.c.l.b16 %v1058
    %v1078 = vunpack.c.h.b16 %v1058
    %v1079 = vunpack.c.l.b16 %v1059
    %v1080 = vunpack.c.h.b16 %v1059
    %v1081 = vunpack.c.l.b16 %v1060
    %v1082 = vunpack.c.h.b16 %v1060
    %v1083 = vunpack.c.l.b16 %v1061
    %v1084 = vunpack.c.h.b16 %v1061
    %v1085 = vunpack.c.l.b16 %v1062
    %v1086 = vunpack.c.h.b16 %v1062
    %v1087 = vpack.c.b16 %v1071, %v1071
    %v1088 = vpack.c.b16 %v1072, %v1072
    %v1089 = vpack.c.b16 %v1073, %v1073
    %v1090 = vpack.c.b16 %v1074, %v1074
    %v1091 = vpack.c.b16 %v1075, %v1075
    %v1092 = vpack.c.b16 %v1076, %v1076
    %v1093 = vpack.c.b16 %v1077, %v1077
    %v1094 = vpack.c.b16 %v1078, %v1078
    %v1095 = vpack.c.b16 %v1079, %v1079
    %v1096 = vpack.c.b16 %v1080, %v1080
    %v1097 = vpack.c.b16 %v1081, %v1081
    %v1098 = vpack.c.b16 %v1082, %v1082
    %v1099 = vpack.c.b16 %v1083, %v1083
    %v1100 = vpack.c.b16 %v1084, %v1084
    %v1101 = vpack.c.b16 %v1085, %v1085
    %v1102 = vpack.c.b16 %v1086, %v1086
    %s1119 = scalar_lea.vmem [#allocation7], 256
    %1120 = vst [vmem:[%s1119] sm:$0xf] %v1087
    %1121 = vst [vmem:[%s1119 + $0x4] sm:$0xf] %v1088
    %1122 = vst [vmem:[%s1119 + $0x8] sm:$0xf] %v1089
    %1123 = vst [vmem:[%s1119 + $0xc] sm:$0xf] %v1090
    %1124 = vst [vmem:[%s1119 + $0x10] sm:$0xf] %v1091
    %1125 = vst [vmem:[%s1119 + $0x14] sm:$0xf] %v1092
    %1126 = vst [vmem:[%s1119 + $0x18] sm:$0xf] %v1093
    %1127 = vst [vmem:[%s1119 + $0x1c] sm:$0xf] %v1094
    %1128 = vst [vmem:[%s1119 + $0x20] sm:$0xf] %v1095
    %1129 = vst [vmem:[%s1119 + $0x24] sm:$0xf] %v1096
    %1130 = vst [vmem:[%s1119 + $0x28] sm:$0xf] %v1097
    %1131 = vst [vmem:[%s1119 + $0x2c] sm:$0xf] %v1098
    %1132 = vst [vmem:[%s1119 + $0x30] sm:$0xf] %v1099
    %1133 = vst [vmem:[%s1119 + $0x34] sm:$0xf] %v1100
    %1134 = vst [vmem:[%s1119 + $0x38] sm:$0xf] %v1101
    %1135 = vst [vmem:[%s1119 + $0x3c] sm:$0xf] %v1102
    %v1136 = vpack.c.bf16 %v660, %v656
    %v1137 = vpack.c.bf16 %v670, %v666
    %v1138 = vpack.c.bf16 %v680, %v676
    %v1139 = vpack.c.bf16 %v690, %v686
    %v1140 = vpack.c.bf16 %v700, %v696
    %v1141 = vpack.c.bf16 %v710, %v706
    %v1142 = vpack.c.bf16 %v720, %v716
    %v1143 = vpack.c.bf16 %v730, %v726
    %v1152 = vunpack.c.l.b16 %v1136
    %v1153 = vunpack.c.h.b16 %v1136
    %v1154 = vunpack.c.l.b16 %v1137
    %v1155 = vunpack.c.h.b16 %v1137
    %v1156 = vunpack.c.l.b16 %v1138
    %v1157 = vunpack.c.h.b16 %v1138
    %v1158 = vunpack.c.l.b16 %v1139
    %v1159 = vunpack.c.h.b16 %v1139
    %v1160 = vunpack.c.l.b16 %v1140
    %v1161 = vunpack.c.h.b16 %v1140
    %v1162 = vunpack.c.l.b16 %v1141
    %v1163 = vunpack.c.h.b16 %v1141
    %v1164 = vunpack.c.l.b16 %v1142
    %v1165 = vunpack.c.h.b16 %v1142
    %v1166 = vunpack.c.l.b16 %v1143
    %v1167 = vunpack.c.h.b16 %v1143
    %v1168 = vpack.c.b16 %v1152, %v1152
    %v1169 = vpack.c.b16 %v1153, %v1153
    %v1170 = vpack.c.b16 %v1154, %v1154
    %v1171 = vpack.c.b16 %v1155, %v1155
    %v1172 = vpack.c.b16 %v1156, %v1156
    %v1173 = vpack.c.b16 %v1157, %v1157
    %v1174 = vpack.c.b16 %v1158, %v1158
    %v1175 = vpack.c.b16 %v1159, %v1159
    %v1176 = vpack.c.b16 %v1160, %v1160
    %v1177 = vpack.c.b16 %v1161, %v1161
    %v1178 = vpack.c.b16 %v1162, %v1162
    %v1179 = vpack.c.b16 %v1163, %v1163
    %v1180 = vpack.c.b16 %v1164, %v1164
    %v1181 = vpack.c.b16 %v1165, %v1165
    %v1182 = vpack.c.b16 %v1166, %v1166
    %v1183 = vpack.c.b16 %v1167, %v1167
    %s1200 = scalar_lea.vmem [#allocation7], 320
    %1201 = vst [vmem:[%s1200] sm:$0xf] %v1168
    %1202 = vst [vmem:[%s1200 + $0x4] sm:$0xf] %v1169
    %1203 = vst [vmem:[%s1200 + $0x8] sm:$0xf] %v1170
    %1204 = vst [vmem:[%s1200 + $0xc] sm:$0xf] %v1171
    %1205 = vst [vmem:[%s1200 + $0x10] sm:$0xf] %v1172
    %1206 = vst [vmem:[%s1200 + $0x14] sm:$0xf] %v1173
    %1207 = vst [vmem:[%s1200 + $0x18] sm:$0xf] %v1174
    %1208 = vst [vmem:[%s1200 + $0x1c] sm:$0xf] %v1175
    %1209 = vst [vmem:[%s1200 + $0x20] sm:$0xf] %v1176
    %1210 = vst [vmem:[%s1200 + $0x24] sm:$0xf] %v1177
    %1211 = vst [vmem:[%s1200 + $0x28] sm:$0xf] %v1178
    %1212 = vst [vmem:[%s1200 + $0x2c] sm:$0xf] %v1179
    %1213 = vst [vmem:[%s1200 + $0x30] sm:$0xf] %v1180
    %1214 = vst [vmem:[%s1200 + $0x34] sm:$0xf] %v1181
    %1215 = vst [vmem:[%s1200 + $0x38] sm:$0xf] %v1182
    %1216 = vst [vmem:[%s1200 + $0x3c] sm:$0xf] %v1183
    // Predicated region
    $region18: #{tpu_custom_call.1} parent=1 // pred_check
      _
    $region19: #{tpu_custom_call.1} parent=1 // pred_check_branch
      %1218 = sbr.rel (0) target = $region21
    $region20: #{tpu_custom_call.1} parent=1 // pred_region
      %s1220 = ssub.s32 6144, 6144
      %1221 = vsyncadd [#allocation4], %s1220
      %s1222 = sshll.u32 [#allocation7], 4
      %s1223 = int_to_ptr.vmem [resolvable:$true] %s1222
      %1228 = dma.vmem_to_hbm [thread:$0]  %s1223, 6144, %s2, [#allocation4], 64, 64, 4
    $region21: #{tpu_custom_call.1} parent=1 // pred_fallthru
      _
    // Predicated region
    $region22: #{tpu_custom_call.1} parent=1 // pred_check
      _
    $region23: #{tpu_custom_call.1} parent=1 // pred_check_branch
      %1230 = sbr.rel (0) target = $region25
    $region24: #{tpu_custom_call.1} parent=1 // pred_region
      %1231 = dma.done [#allocation4], 6144
    $region25: #{tpu_custom_call.1} parent=1 // pred_fallthru
      _
    %1232 = vsyncpa [#allocation3], 1
    %1233 = vsyncpa [#allocation6], 1
    %1234 = vsyncpa [#allocation4], 1

</llo_original>
